<compile_context>
chip_gen: v7x
topology: tpu7x:2x2x1
jax: 0.10.0
libtpu: 0.0.40
codegen_flags: <defaults>
</compile_context>

<pallas_src>
import functools

import jax
import jax.numpy as jnp
from jax.experimental import pallas as pl
from jax.experimental.pallas import tpu as pltpu

EPS = 1e-5
LANE = 128


# ---------------------------------------------------------------------------
# small helpers (plain JAX glue: padding, block-diag packing, adjacency)
# ---------------------------------------------------------------------------
def _pad_dim(d):
    return ((d + LANE - 1) // LANE) * LANE


def _pick_tile(n, prefs=(512, 256, 128)):
    # biggest clean tile; full axis if nothing divides (block == full dim is OK).
    for t in prefs:
        if n % t == 0:
            return t
    return n


def pad_2d(a, rows, cols):
    out = jnp.zeros((rows, cols), a.dtype)
    return out.at[: a.shape[0], : a.shape[1]].set(a)


def pad_row(v, cols, fill=0.0):
    out = jnp.full((1, cols), fill, v.dtype)
    return out.at[:, : v.shape[1]].set(v)


def block_diag(a, b):
    top = jnp.concatenate([a, jnp.zeros((a.shape[0], b.shape[1]), a.dtype)], axis=1)
    bot = jnp.concatenate([jnp.zeros((b.shape[0], a.shape[1]), b.dtype), b], axis=1)
    return jnp.concatenate([top, bot], axis=0)


def build_norm_adj(edge_index, edge_weight, n):
    """Dense GCN adjacency: D^{-1/2} (A + I) D^{-1/2}, A[dst, src] = w."""
    src = edge_index[0]
    dst = edge_index[1]
    a = jnp.zeros((n, n), jnp.float32).at[dst, src].add(edge_weight)
    a = a + jnp.eye(n, dtype=jnp.float32)  # self loops (weight 1.0)
    deg = jnp.sum(a, axis=1)
    dinv = jax.lax.rsqrt(deg)
    return a * dinv[:, None] * dinv[None, :]


def glorot(key, shape):
    fan_in, fan_out = shape
    lim = jnp.sqrt(6.0 / (fan_in + fan_out))
    return jax.random.uniform(key, shape, jnp.float32, -lim, lim)


def init_gcn_layer(key, in_dim, out_dim):
    return dict(
        w=glorot(key, (in_dim, out_dim)),
        b=jnp.zeros((1, out_dim), jnp.float32),
        gamma=jnp.ones((1, out_dim), jnp.float32),
        beta=jnp.zeros((1, out_dim), jnp.float32),
        prelu=jnp.full((1,), 0.25, jnp.float32),
    )


def pack_dual_layer(ps, pt, in_pad, out_pad, first):
    """Pack student+teacher layer params into one concatenated, padded set."""
    ws = pad_2d(ps["w"], in_pad, out_pad)
    wt = pad_2d(pt["w"], in_pad, out_pad)
    if first:
        # layer 0: both branches consume the same x -> stack along output axis.
        w_cat = jnp.concatenate([ws, wt], axis=1)          # (in_pad, 2*out_pad)
    else:
        # later layers: block-diagonal so each branch sees only its own half.
        w_cat = block_diag(ws, wt)                          # (2*in_pad, 2*out_pad)
    b_cat = jnp.concatenate([pad_row(ps["b"], out_pad), pad_row(pt["b"], out_pad)], 1)
    g_cat = jnp.concatenate([pad_row(ps["gamma"], out_pad, 1.0),
                             pad_row(pt["gamma"], out_pad, 1.0)], 1)
    be_cat = jnp.concatenate([pad_row(ps["beta"], out_pad),
                              pad_row(pt["beta"], out_pad)], 1)
    prelu = jnp.stack([ps["prelu"][0], pt["prelu"][0]]).astype(jnp.float32)
    return dict(w=w_cat.astype(jnp.bfloat16), b=b_cat, gamma=g_cat, beta=be_cat,
                prelu=prelu, half=int(out_pad))


# ---------------------------------------------------------------------------
# Kernel 1: hoisted XW = H_cat @ W_cat (row-tiled, bf16 MXU, f32 accumulate)
# ---------------------------------------------------------------------------
def xw_kernel(h_ref, w_ref, o_ref):
    o_ref[...] = jnp.dot(h_ref[...].astype(jnp.bfloat16), w_ref[...],
                         preferred_element_type=jnp.float32).astype(jnp.bfloat16)


def xw_matmul(h, w_cat):
    n, fin = h.shape
    fout = w_cat.shape[1]
    tm = _pick_tile(n)
    return pl.pallas_call(
        xw_kernel,
        out_shape=jax.ShapeDtypeStruct((n, fout), jnp.bfloat16),
        grid=(n // tm,),
        in_specs=[pl.BlockSpec((tm, fin), lambda i: (i, 0)),
                  pl.BlockSpec((fin, fout), lambda i: (0, 0))],
        out_specs=pl.BlockSpec((tm, fout), lambda i: (i, 0)),
        compiler_params=pltpu.CompilerParams(dimension_semantics=("parallel",)),
    )(h, w_cat)


# ---------------------------------------------------------------------------
# Kernel 2: tiled A_hat @ XW + b, with per-row-tile BN partial statistics
#           grid = (row tiles, reduction tiles); f32 accumulator scratch
# ---------------------------------------------------------------------------
def spmm_stats_kernel(a_ref, xw_ref, bias_ref, h_ref, stats_ref, acc_ref):
    k = pl.program_id(1)

    @pl.when(k == 0)
    def _():
        acc_ref[...] = jnp.zeros_like(acc_ref)

    acc_ref[...] += jnp.dot(a_ref[...], xw_ref[...],
                            preferred_element_type=jnp.float32)

    @pl.when(k == pl.num_programs(1) - 1)
    def _():
        h = acc_ref[...] + bias_ref[...]
        h_ref[...] = h
        # partial BN stats (f32 accumulation; E[x^2]-E[x]^2 applied later).
        s1 = jnp.sum(h, axis=0, keepdims=True)
        s2 = jnp.sum(h * h, axis=0, keepdims=True)
        stats_ref[0, :, :] = jnp.concatenate([s1, s2], axis=0)


def spmm_bias_stats(a_hat, xw, bias):
    n = a_hat.shape[0]
    f = xw.shape[1]
    tm = _pick_tile(n)
    tk = _pick_tile(n)
    gm, gk = n // tm, n // tk
    return pl.pallas_call(
        spmm_stats_kernel,
        out_shape=(jax.ShapeDtypeStruct((n, f), jnp.float32),
                   jax.ShapeDtypeStruct((gm, 2, f), jnp.float32)),
        grid=(gm, gk),
        in_specs=[pl.BlockSpec((tm, tk), lambda i, k: (i, k)),
                  pl.BlockSpec((tk, f), lambda i, k: (k, 0)),
                  pl.BlockSpec((1, f), lambda i, k: (0, 0))],
        out_specs=(pl.BlockSpec((tm, f), lambda i, k: (i, 0)),
                   pl.BlockSpec((1, 2, f), lambda i, k: (i, 0, 0))),
        scratch_shapes=[pltpu.VMEM((tm, f), jnp.float32)],
        compiler_params=pltpu.CompilerParams(
            dimension_semantics=("parallel", "arbitrary"),
            vmem_limit_bytes=48 * 1024 * 1024),
    )(a_hat, xw, bias)


# ---------------------------------------------------------------------------
# Kernel 3a: reduce partial BN stats ONCE into per-feature scale / shift
# ---------------------------------------------------------------------------
def bn_scale_shift_kernel(stats_ref, gamma_ref, beta_ref, scale_ref, shift_ref,
                          *, inv_n):
    st = jnp.sum(stats_ref[...], axis=0)                  # (2, F)
    mean = st[0:1, :] * inv_n
    var = jnp.maximum(st[1:2, :] * inv_n - mean * mean, 0.0)
    scale = gamma_ref[...] * jax.lax.rsqrt(var + EPS)
    scale_ref[...] = scale
    shift_ref[...] = beta_ref[...] - mean * scale


def bn_scale_shift(stats, gamma, beta, n):
    f = stats.shape[-1]
    vmem = pl.BlockSpec(memory_space=pltpu.MemorySpace.VMEM)
    return pl.pallas_call(
        functools.partial(bn_scale_shift_kernel, inv_n=1.0 / float(n)),
        out_shape=(jax.ShapeDtypeStruct((1, f), jnp.float32),
                   jax.ShapeDtypeStruct((1, f), jnp.float32)),
        in_specs=[vmem, vmem, vmem],
        out_specs=(vmem, vmem),
    )(stats, gamma, beta)


# ---------------------------------------------------------------------------
# Kernel 3b: apply BN (precomputed scale/shift) + PReLU, row-tiled (pure VPU)
# ---------------------------------------------------------------------------
def bn_prelu_kernel(h_ref, scale_ref, shift_ref, prelu_ref, o_ref, *, half):
    hn = h_ref[...] * scale_ref[...] + shift_ref[...]
    # student columns use slope[0], teacher columns slope[1]
    col = jax.lax.broadcasted_iota(jnp.int32, hn.shape, 1)
    slope = jnp.where(col < half, prelu_ref[0], prelu_ref[1])
    o_ref[...] = jnp.where(hn >= 0.0, hn, slope * hn)


def bn_prelu(hpre, scale, shift, prelu, half):
    n, f = hpre.shape
    tm = _pick_tile(n)
    return pl.pallas_call(
        functools.partial(bn_prelu_kernel, half=int(half)),
        out_shape=jax.ShapeDtypeStruct((n, f), jnp.float32),
        grid=(n // tm,),
        in_specs=[pl.BlockSpec((tm, f), lambda i: (i, 0)),
                  pl.BlockSpec((1, f), lambda i: (0, 0)),
                  pl.BlockSpec((1, f), lambda i: (0, 0)),
                  pl.BlockSpec(memory_space=pltpu.MemorySpace.SMEM)],
        out_specs=pl.BlockSpec((tm, f), lambda i: (i, 0)),
        compiler_params=pltpu.CompilerParams(dimension_semantics=("parallel",)),
    )(hpre, scale, shift, prelu)


# ---------------------------------------------------------------------------
# Kernel 4: fused student predictor + EMA update + double KD loss
#   pred    = ReLU(Linear(ReLU(BN(Linear(student)))))
#   new_mom = alpha*mom + (1-alpha)*teacher            (aliased in place)
#   loss    = (1-beta)*KD(pred, teacher) + beta*KD(pred, new_mom)
# Takes the concatenated [N, 2*rep_pad] activation slab directly and slices
# student/teacher inside (static 128-aligned slices, no HBM copies).
# ---------------------------------------------------------------------------
def pred_kd_ema_kernel(h_ref, w1_ref, b1_ref, g_ref, be_ref, w2_ref, b2_ref,
                       mom_ref, newmom_ref, loss_ref, *,
                       fp, inv_t, t_sq, beta, alpha, rep_dim):
    student = h_ref[:, :fp]
    teacher = h_ref[:, fp:]

    # --- student predictor: Linear -> BN(batch stats) -> ReLU -> Linear -> ReLU
    hp = jnp.dot(student.astype(jnp.bfloat16), w1_ref[...],
                 preferred_element_type=jnp.float32) + b1_ref[...]
    mean = jnp.mean(hp, axis=0, keepdims=True)
    var = jnp.mean((hp - mean) ** 2, axis=0, keepdims=True)
    hn = (hp - mean) * jax.lax.rsqrt(var + EPS) * g_ref[...] + be_ref[...]
    hn = jnp.maximum(hn, 0.0)
    pred = jnp.dot(hn.astype(jnp.bfloat16), w2_ref[...],
                   preferred_element_type=jnp.float32) + b2_ref[...]
    pred = jnp.maximum(pred, 0.0)

    # --- EMA update of the momentum buffer ---
    m_new = alpha * mom_ref[...] + (1.0 - alpha) * teacher
    newmom_ref[...] = m_new

    # --- double KD loss (masked to the real rep_dim columns) ---
    n, fpad = pred.shape
    col = jax.lax.broadcasted_iota(jnp.int32, (n, fpad), 1)
    valid = col < rep_dim
    validf = valid.astype(jnp.float32)
    neg_big = jnp.float32(-1e30)

    def masked_softmax(z):
        z = jnp.where(valid, z * inv_t, neg_big)
        zmax = jnp.max(z, axis=-1, keepdims=True)
        zs = z - zmax
        ez = jnp.where(valid, jnp.exp(zs), 0.0)
        sez = jnp.sum(ez, axis=-1, keepdims=True)
        log_soft = zs - jnp.log(sez)
        soft = ez * pl.reciprocal(sez, approx=True)
        return log_soft, soft

    log_ps, _ = masked_softmax(pred)
    log_pt, pt = masked_softmax(teacher)
    log_pm, pm = masked_softmax(m_new)

    inv_n = jnp.float32(1.0 / n)
    kl_t = jnp.sum(validf * pt * (log_pt - log_ps), axis=-1, keepdims=True)
    kl_m = jnp.sum(validf * pm * (log_pm - log_ps), axis=-1, keepdims=True)
    l_t = jnp.sum(kl_t) * inv_n * t_sq   # batchmean * T^2
    l_m = jnp.sum(kl_m) * inv_n * t_sq
    loss_ref[0, 0] = (1.0 - beta) * l_t + beta * l_m


def predictor_kd_ema(h, w1, b1, gamma, beta_bn, w2, b2, mom,
                     temperature, beta, alpha, rep_dim, rep_pad):
    n = h.shape[0]
    vmem = pl.BlockSpec(memory_space=pltpu.MemorySpace.VMEM)
    smem = pl.BlockSpec(memory_space=pltpu.MemorySpace.SMEM)
    new_mom, loss = pl.pallas_call(
        functools.partial(pred_kd_ema_kernel, fp=int(rep_pad),
                          inv_t=1.0 / float(temperature),
                          t_sq=float(temperature) * float(temperature),
                          beta=float(beta), alpha=float(alpha),
                          rep_dim=int(rep_dim)),
        out_shape=(jax.ShapeDtypeStruct((n, rep_pad), jnp.float32),
                   jax.ShapeDtypeStruct((1, 1), jnp.float32)),
        in_specs=[vmem] * 8,
        out_specs=(vmem, smem),
        input_output_aliases={7: 0},     # momentum buffer updated in place
    )(h, w1, b1, gamma, beta_bn, w2, b2, mom)
    return new_mom, loss[0, 0]


# ---------------------------------------------------------------------------
# MoDET module
# ---------------------------------------------------------------------------
class MoDETPallas:
    def __init__(self, layer_config, pred_hid, temperature, momentum_buffer,
                 beta, alpha, key):
        self.temperature = float(temperature)
        self.beta = float(beta)
        self.alpha = float(alpha)
        self.rep_dim = layer_config[-1]
        self.in_pad = _pad_dim(layer_config[0])
        self.rep_pad = _pad_dim(layer_config[-1])

        n_layers = len(layer_config) - 1
        keys = jax.random.split(key, n_layers + 2)

        # student encoder params; teacher = deepcopy(student) -> identical values
        raw = [init_gcn_layer(keys[i], layer_config[i], layer_config[i + 1])
               for i in range(n_layers)]
        teacher_raw = [dict(p) for p in raw]

        self.layers = []
        for i in range(n_layers):
            in_pad = _pad_dim(layer_config[i])
            out_pad = _pad_dim(layer_config[i + 1])
            self.layers.append(pack_dual_layer(raw[i], teacher_raw[i],
                                               in_pad, out_pad, first=(i == 0)))

        # student predictor params (padded to 128 lanes)
        hid_pad = _pad_dim(2 * pred_hid)
        self.pred_w1 = pad_2d(glorot(keys[-2], (self.rep_dim, 2 * pred_hid)),
                              self.rep_pad, hid_pad).astype(jnp.bfloat16)
        self.pred_b1 = jnp.zeros((1, hid_pad), jnp.float32)
        self.pred_gamma = jnp.ones((1, hid_pad), jnp.float32)
        self.pred_beta = jnp.zeros((1, hid_pad), jnp.float32)
        self.pred_w2 = pad_2d(glorot(keys[-1], (2 * pred_hid, self.rep_dim)),
                              hid_pad, self.rep_pad).astype(jnp.bfloat16)
        self.pred_b2 = jnp.zeros((1, self.rep_pad), jnp.float32)

        # momentum buffer stored padded to rep_pad lanes
        if momentum_buffer is not None and momentum_buffer.shape[-1] != self.rep_pad:
            momentum_buffer = pad_2d(momentum_buffer.astype(jnp.float32),
                                     momentum_buffer.shape[0], self.rep_pad)
        self.momentum_buffer = momentum_buffer

    def forward(self, x, y, edge_index, neighbor, edge_weight):
        del y, neighbor  # unused in the reference forward
        n = x.shape[0]
        # dense GCN-normalized adjacency streamed in bf16 (halves HBM bytes)
        a_hat = build_norm_adj(edge_index, edge_weight, n).astype(jnp.bfloat16)
        h = pad_2d(x.astype(jnp.float32), n, self.in_pad)

        # fused student+teacher encoder: one concatenated 2*F-lane activation,
        # A_hat streamed once per layer.  (Teacher is no-grad in the reference;
        # forward-only here so no stop_gradient is required.)
        for p in self.layers:
            xw = xw_matmul(h, p["w"])                          # hoisted X @ W
            hpre, stats = spmm_bias_stats(a_hat, xw, p["b"])   # tiled A_hat@XW+b
            scale, shift = bn_scale_shift(stats, p["gamma"], p["beta"], n)
            h = bn_prelu(hpre, scale, shift, p["prelu"], p["half"])

        if self.momentum_buffer is None:
            mom_in = jnp.zeros((n, self.rep_pad), jnp.float32)
            alpha_eff = 0.0          # first call: buffer := teacher (exactly)
        else:
            mom_in = self.momentum_buffer
            alpha_eff = self.alpha

        new_mom, loss = predictor_kd_ema(
            h, self.pred_w1, self.pred_b1, self.pred_gamma, self.pred_beta,
            self.pred_w2, self.pred_b2, mom_in,
            self.temperature, self.beta, alpha_eff, self.rep_dim, self.rep_pad)
        self.momentum_buffer = new_mom     # padded; updated in place via alias

        student = h[:, : self.rep_dim]
        return student, jnp.mean(loss)


# ---------------------------------------------------------------------------
if __name__ == "__main__":
    key = jax.random.PRNGKey(0)
    k_x, k_w, k_mom, k_ew = jax.random.split(key, 4)

    N = 256                      # number of graph nodes (exercises the tiled grid)
    layer_config = [32, 64, 16]  # [in_dim, hidden, rep_dim]
    pred_hid = 16

    # node features
    x = jax.random.normal(k_x, (N, layer_config[0]), jnp.float32)
    # deterministic ring graph (both directions)
    idx = jnp.arange(N, dtype=jnp.int32)
    src = jnp.concatenate([idx, (idx + 1) % N])
    dst = jnp.concatenate([(idx + 1) % N, idx])
    edge_index = jnp.stack([src, dst])                       # (2, 2N)
    edge_weight = jax.random.uniform(k_ew, (2 * N,), jnp.float32, 0.5, 1.5)
    # pre-existing momentum buffer (exercises the fused EMA-update path)
    momentum_buffer = 0.1 * jax.random.normal(k_mom, (N, layer_config[-1]),
                                              jnp.float32)

    model = MoDETPallas(layer_config, pred_hid, temperature=2.0,
                        momentum_buffer=momentum_buffer, beta=0.6, alpha=0.9,
                        key=k_w)

    student, loss = model.forward(x, y=None, edge_index=edge_index,
                                  neighbor=None, edge_weight=edge_weight)
    jax.block_until_ready(student)
    jax.block_until_ready(loss)
    assert student.shape == (N, layer_config[-1])
    assert loss.shape == ()
    print("KERNEL_OK")
</pallas_src>

<mosaic_0001>
module attributes {stable_mosaic.version = 11 : i64} {
  func.func @xw_kernel(%arg0: i32, %arg1: memref<256x128xf32, #tpu.memory_space<vmem>>, %arg2: memref<128x256xbf16, #tpu.memory_space<vmem>>, %arg3: memref<256x256xbf16, #tpu.memory_space<vmem>>) attributes {dimension_semantics = [#tpu.dimension_semantics<parallel>], iteration_bounds = array<i64: 1>, scalar_prefetch = 0 : i64, scratch_operands = 0 : i64, tpu.core_type = #tpu.core_type<tc>, window_params = [{transform_indices = @transform_0, window_bounds = array<i64: 256, 128>}, {pipeline_mode = #tpu.pipeline_mode<synchronous>, transform_indices = @transform_1, window_bounds = array<i64: 128, 256>}, {transform_indices = @transform_2, window_bounds = array<i64: 256, 256>}]} {
    %c0 = arith.constant 0 : index
    %c0_0 = arith.constant 0 : index
    %0 = vector.load %arg1[%c0, %c0_0] : memref<256x128xf32, #tpu.memory_space<vmem>>, vector<256x128xf32>
    %1 = arith.truncf %0 : vector<256x128xf32> to vector<256x128xbf16>
    %c0_1 = arith.constant 0 : index
    %c0_2 = arith.constant 0 : index
    %2 = vector.load %arg2[%c0_1, %c0_2] : memref<128x256xbf16, #tpu.memory_space<vmem>>, vector<128x256xbf16>
    %cst = arith.constant dense<0.000000e+00> : vector<256x256xf32>
    %3 = tpu.matmul %1, %2, %cst {dimension_numbers = #tpu.dot_dimension_numbers<[1], [0], [0], [1], [0, 0, 1, 1], [], []>} : vector<256x128xbf16>, vector<128x256xbf16>, vector<256x256xf32> -> vector<256x256xf32>
    %4 = arith.truncf %3 : vector<256x256xf32> to vector<256x256xbf16>
    %c0_3 = arith.constant 0 : index
    %c0_4 = arith.constant 0 : index
    %5 = vector.load %arg3[%c0_3, %c0_4] : memref<256x256xbf16, #tpu.memory_space<vmem>>, vector<256x256xbf16>
    tpu.vector_store %arg3[%c0_3, %c0_4], %4 {strides = array<i32>} : memref<256x256xbf16, #tpu.memory_space<vmem>>, vector<256x256xbf16>,
    return
  }
  func.func @transform_0(%arg0: i32) -> (i32, i32) {
    %c0_i32 = arith.constant 0 : i32
    %c0_i32_0 = arith.constant 0 : i32
    return %arg0, %c0_i32 : i32, i32
  }
  func.func @transform_1(%arg0: i32) -> (i32, i32) {
    %c0_i32 = arith.constant 0 : i32
    %c0_i32_0 = arith.constant 0 : i32
    %c0_i32_1 = arith.constant 0 : i32
    return %c0_i32, %c0_i32_0 : i32, i32
  }
  func.func @transform_2(%arg0: i32) -> (i32, i32) {
    %c0_i32 = arith.constant 0 : i32
    %c0_i32_0 = arith.constant 0 : i32
    return %arg0, %c0_i32 : i32, i32
  }
}

</mosaic_0001>

<llo_original>
// kernel: tpu_custom_call.1
$region0: #{tpu_custom_call.1}
  #allocation0 [shape = 'u32[]', space=smem, size = 0x4, offset = 0x4, fixed_abs, tag = 'smem constant byte address 0x4 - core index']
  #allocation1 [shape = 'u32[144,128]{1,0:T(1,128)}', space=vmem, size = 0x12000, scoped, tag = 'internal scratch']
  %s0 = inlined_call_operand.hbm [shape: f32[256,128], index: 0, kind: input, shape index: {}]
  %s1 = inlined_call_operand.hbm [shape: bf16[128,256], index: 1, kind: input, shape index: {}]
  %s2 = inlined_call_operand.hbm [shape: bf16[256,256], index: 2, kind: output, shape index: {}]
  %s3 = sld [smem:[#allocation0]]
  $region26: #{tpu_custom_call.1} parent=0
    _
  %s5 = ssub.s32 1, %s3
  %s6 = scalar_select 0, %s5, %s3
  $region1: #{tpu_custom_call.1} parent=0
    #allocation2 [shape = 'u8[131072]{0}', space=vmem, size = 0x20000, scoped, tag = 'input window, operand 0, single buffered']
    #allocation3 [shape = 's32[1]{0}', space=sflag, size = 0x4, scoped, tag = 'scoped memory for tpu_custom_call.1']
    #allocation4 [shape = 's32[1]{0}', space=sflag, size = 0x4, scoped, tag = 'scoped memory for tpu_custom_call.1']
    #allocation5 [shape = 'u8[65536]{0}', space=vmem, size = 0x10000, scoped, tag = 'input window, operand 1, single buffered']
    #allocation6 [shape = 's32[1]{0}', space=sflag, size = 0x4, scoped, tag = 'scoped memory for tpu_custom_call.1']
    #allocation7 [shape = 'u8[131072]{0}', space=vmem, size = 0x20000, scoped, tag = 'output window, operand 0, single buffered']
    %7 = vsyncpa [#allocation3], 0
    %8 = vsyncpa [#allocation6], 0
    %9 = vsyncpa [#allocation4], 0
    // Predicated region
    $region2: #{tpu_custom_call.1} parent=1 // pred_check
      _
    $region3: #{tpu_custom_call.1} parent=1 // pred_check_branch
      %11 = sbr.rel (0) target = $region5
    $region4: #{tpu_custom_call.1} parent=1 // pred_region
      %s13 = ssub.s32 4096, 4096
      %14 = vsyncadd [#allocation3], %s13
      %s15 = sshll.u32 [#allocation2], 4
      %s16 = int_to_ptr.vmem [resolvable:$true] %s15
      %21 = dma.hbm_to_vmem [thread:$0]  %s0, 4096, %s16, [#allocation3], 128, 128, 8
    $region5: #{tpu_custom_call.1} parent=1 // pred_fallthru
      _
    // Predicated region
    $region6: #{tpu_custom_call.1} parent=1 // pred_check
      _
    $region7: #{tpu_custom_call.1} parent=1 // pred_check_branch
      %23 = sbr.rel (0) target = $region9
    $region8: #{tpu_custom_call.1} parent=1 // pred_region
      %s25 = ssub.s32 2048, 2048
      %26 = vsyncadd [#allocation6], %s25
      %s27 = sshll.u32 [#allocation5], 4
      %s28 = int_to_ptr.vmem [resolvable:$true] %s27
      %33 = dma.hbm_to_vmem [thread:$0]  %s1, 2048, %s28, [#allocation6], 128, 128, 8
    $region9: #{tpu_custom_call.1} parent=1 // pred_fallthru
      _
    // Predicated region
    $region10: #{tpu_custom_call.1} parent=1 // pred_check
      _
    $region11: #{tpu_custom_call.1} parent=1 // pred_check_branch
      %35 = sbr.rel (0) target = $region13
    $region12: #{tpu_custom_call.1} parent=1 // pred_region
      %36 = dma.done [#allocation3], 4096
    $region13: #{tpu_custom_call.1} parent=1 // pred_fallthru
      _
    // Predicated region
    $region14: #{tpu_custom_call.1} parent=1 // pred_check
      _
    $region15: #{tpu_custom_call.1} parent=1 // pred_check_branch
      %38 = sbr.rel (0) target = $region17
    $region16: #{tpu_custom_call.1} parent=1 // pred_region
      %39 = dma.done [#allocation6], 2048
    $region17: #{tpu_custom_call.1} parent=1 // pred_fallthru
      _
    %v41 = vld [vmem:[#allocation2] sm:$0xff]
    %v42 = vld [vmem:[#allocation2 + $0x8] sm:$0xff]
    %v43 = vld [vmem:[#allocation2 + $0x10] sm:$0xff]
    %v44 = vld [vmem:[#allocation2 + $0x18] sm:$0xff]
    %v45 = vld [vmem:[#allocation2 + $0x20] sm:$0xff]
    %v46 = vld [vmem:[#allocation2 + $0x28] sm:$0xff]
    %v47 = vld [vmem:[#allocation2 + $0x30] sm:$0xff]
    %v48 = vld [vmem:[#allocation2 + $0x38] sm:$0xff]
    %v49 = vld [vmem:[#allocation2 + $0x40] sm:$0xff]
    %v50 = vld [vmem:[#allocation2 + $0x48] sm:$0xff]
    %v51 = vld [vmem:[#allocation2 + $0x50] sm:$0xff]
    %v52 = vld [vmem:[#allocation2 + $0x58] sm:$0xff]
    %v53 = vld [vmem:[#allocation2 + $0x60] sm:$0xff]
    %v54 = vld [vmem:[#allocation2 + $0x68] sm:$0xff]
    %v55 = vld [vmem:[#allocation2 + $0x70] sm:$0xff]
    %v56 = vld [vmem:[#allocation2 + $0x78] sm:$0xff]
    %v57 = vld [vmem:[#allocation2 + $0x80] sm:$0xff]
    %v58 = vld [vmem:[#allocation2 + $0x88] sm:$0xff]
    %v59 = vld [vmem:[#allocation2 + $0x90] sm:$0xff]
    %v60 = vld [vmem:[#allocation2 + $0x98] sm:$0xff]
    %v61 = vld [vmem:[#allocation2 + $0xa0] sm:$0xff]
    %v62 = vld [vmem:[#allocation2 + $0xa8] sm:$0xff]
    %v63 = vld [vmem:[#allocation2 + $0xb0] sm:$0xff]
    %v64 = vld [vmem:[#allocation2 + $0xb8] sm:$0xff]
    %v65 = vld [vmem:[#allocation2 + $0xc0] sm:$0xff]
    %v66 = vld [vmem:[#allocation2 + $0xc8] sm:$0xff]
    %v67 = vld [vmem:[#allocation2 + $0xd0] sm:$0xff]
    %v68 = vld [vmem:[#allocation2 + $0xd8] sm:$0xff]
    %v69 = vld [vmem:[#allocation2 + $0xe0] sm:$0xff]
    %v70 = vld [vmem:[#allocation2 + $0xe8] sm:$0xff]
    %v71 = vld [vmem:[#allocation2 + $0xf0] sm:$0xff]
    %v72 = vld [vmem:[#allocation2 + $0xf8] sm:$0xff]
    %v73 = vpack.c.bf16 %v42, %v41
    %v74 = vpack.c.bf16 %v44, %v43
    %v75 = vpack.c.bf16 %v46, %v45
    %v76 = vpack.c.bf16 %v48, %v47
    %v77 = vpack.c.bf16 %v50, %v49
    %v78 = vpack.c.bf16 %v52, %v51
    %v79 = vpack.c.bf16 %v54, %v53
    %v80 = vpack.c.bf16 %v56, %v55
    %v81 = vpack.c.bf16 %v58, %v57
    %v82 = vpack.c.bf16 %v60, %v59
    %v83 = vpack.c.bf16 %v62, %v61
    %v84 = vpack.c.bf16 %v64, %v63
    %v85 = vpack.c.bf16 %v66, %v65
    %v86 = vpack.c.bf16 %v68, %v67
    %v87 = vpack.c.bf16 %v70, %v69
    %v88 = vpack.c.bf16 %v72, %v71
    %v89 = vld [vmem:[#allocation5] sm:$0xff]
    %v90 = vld [vmem:[#allocation5 + $0x8] sm:$0xff]
    %v91 = vld [vmem:[#allocation5 + $0x10] sm:$0xff]
    %v92 = vld [vmem:[#allocation5 + $0x18] sm:$0xff]
    %v93 = vld [vmem:[#allocation5 + $0x20] sm:$0xff]
    %v94 = vld [vmem:[#allocation5 + $0x28] sm:$0xff]
    %v95 = vld [vmem:[#allocation5 + $0x30] sm:$0xff]
    %v96 = vld [vmem:[#allocation5 + $0x38] sm:$0xff]
    %v97 = vld [vmem:[#allocation5 + $0x40] sm:$0xff]
    %v98 = vld [vmem:[#allocation5 + $0x48] sm:$0xff]
    %v99 = vld [vmem:[#allocation5 + $0x50] sm:$0xff]
    %v100 = vld [vmem:[#allocation5 + $0x58] sm:$0xff]
    %v101 = vld [vmem:[#allocation5 + $0x60] sm:$0xff]
    %v102 = vld [vmem:[#allocation5 + $0x68] sm:$0xff]
    %v103 = vld [vmem:[#allocation5 + $0x70] sm:$0xff]
    %v104 = vld [vmem:[#allocation5 + $0x78] sm:$0xff]
    %v121 = vunpack.c.l.b16 %v89
    %v122 = vunpack.c.h.b16 %v89
    %v123 = vunpack.c.l.b16 %v90
    %v124 = vunpack.c.h.b16 %v90
    %v125 = vunpack.c.l.b16 %v91
    %v126 = vunpack.c.h.b16 %v91
    %v127 = vunpack.c.l.b16 %v92
    %v128 = vunpack.c.h.b16 %v92
    %v129 = vunpack.c.l.b16 %v93
    %v130 = vunpack.c.h.b16 %v93
    %v131 = vunpack.c.l.b16 %v94
    %v132 = vunpack.c.h.b16 %v94
    %v133 = vunpack.c.l.b16 %v95
    %v134 = vunpack.c.h.b16 %v95
    %v135 = vunpack.c.l.b16 %v96
    %v136 = vunpack.c.h.b16 %v96
    %v137 = vunpack.c.l.b16 %v97
    %v138 = vunpack.c.h.b16 %v97
    %v139 = vunpack.c.l.b16 %v98
    %v140 = vunpack.c.h.b16 %v98
    %v141 = vunpack.c.l.b16 %v99
    %v142 = vunpack.c.h.b16 %v99
    %v143 = vunpack.c.l.b16 %v100
    %v144 = vunpack.c.h.b16 %v100
    %v145 = vunpack.c.l.b16 %v101
    %v146 = vunpack.c.h.b16 %v101
    %v147 = vunpack.c.l.b16 %v102
    %v148 = vunpack.c.h.b16 %v102
    %v149 = vunpack.c.l.b16 %v103
    %v150 = vunpack.c.h.b16 %v103
    %v151 = vunpack.c.l.b16 %v104
    %v152 = vunpack.c.h.b16 %v104
    %v153 = vpack.c.b16 %v123, %v121
    %v154 = vpack.c.b16 %v124, %v122
    %v155 = vpack.c.b16 %v127, %v125
    %v156 = vpack.c.b16 %v128, %v126
    %v157 = vpack.c.b16 %v131, %v129
    %v158 = vpack.c.b16 %v132, %v130
    %v159 = vpack.c.b16 %v135, %v133
    %v160 = vpack.c.b16 %v136, %v134
    %v161 = vpack.c.b16 %v139, %v137
    %v162 = vpack.c.b16 %v140, %v138
    %v163 = vpack.c.b16 %v143, %v141
    %v164 = vpack.c.b16 %v144, %v142
    %v165 = vpack.c.b16 %v147, %v145
    %v166 = vpack.c.b16 %v148, %v146
    %v167 = vpack.c.b16 %v151, %v149
    %v168 = vpack.c.b16 %v152, %v150
    %185 = vmatprep.subr.bf16.mxu0 %v154
    %186 = vmatpush1.bf16.msra.mxu0 %v153
    %187 = vmatprep.subr.bf16.mxu0 %v156
    %188 = vmatpush1.bf16.msra.mxu0 %v155
    %189 = vmatprep.subr.bf16.mxu0 %v158
    %190 = vmatpush1.bf16.msra.mxu0 %v157
    %191 = vmatprep.subr.bf16.mxu0 %v160
    %192 = vmatpush1.bf16.msra.mxu0 %v159
    %193 = vmatprep.subr.bf16.mxu0 %v162
    %194 = vmatpush1.bf16.msra.mxu0 %v161
    %195 = vmatprep.subr.bf16.mxu0 %v164
    %196 = vmatpush1.bf16.msra.mxu0 %v163
    %197 = vmatprep.subr.bf16.mxu0 %v166
    %198 = vmatpush1.bf16.msra.mxu0 %v165
    %199 = vmatprep.subr.bf16.mxu0 %v168
    %200 = vmatpush1.bf16.msra.mxu0 %v167
    %201 = vmatprep.subr.bf16.mxu0 0
    %202 = vmatpush1.bf16.msra.mxu0 0
    %203 = vmatprep.subr.bf16.mxu0 0
    %204 = vmatpush1.bf16.msra.mxu0 0
    %205 = vmatprep.subr.bf16.mxu0 0
    %206 = vmatpush1.bf16.msra.mxu0 0
    %207 = vmatprep.subr.bf16.mxu0 0
    %208 = vmatpush1.bf16.msra.mxu0 0
    %209 = vmatprep.subr.bf16.mxu0 0
    %210 = vmatpush1.bf16.msra.mxu0 0
    %211 = vmatprep.subr.bf16.mxu0 0
    %212 = vmatpush1.bf16.msra.mxu0 0
    %213 = vmatprep.subr.bf16.mxu0 0
    %214 = vmatpush1.bf16.msra.mxu0 0
    %215 = vmatprep.subr.bf16.mxu0 0
    %216 = vmatpush1.bf16.msra.mxu0 0
    %217 = vmatprep.mubr.bf16.mxu0 0
    %218 = vmatmul.mubr.bf16.gmra.mrb[0].mxu0 %v73
    %v219 = vpop.f32.mrb[0].mxu0
    %v220 = vadd.f32 0.0, %v219
    %v221 = vpop.f32.mrb[0].mxu0
    %v222 = vadd.f32 0.0, %v221
    %v223 = vpop.f32.mrb[0].mxu0
    %v224 = vadd.f32 0.0, %v223
    %v225 = vpop.f32.mrb[0].mxu0
    %v226 = vadd.f32 0.0, %v225
    %227 = vmatprep.mubr.bf16.mxu0 0
    %228 = vmatmul.mubr.bf16.gmra.mrb[0].mxu0 %v74
    %v229 = vpop.f32.mrb[0].mxu0
    %v230 = vadd.f32 0.0, %v229
    %v231 = vpop.f32.mrb[0].mxu0
    %v232 = vadd.f32 0.0, %v231
    %v233 = vpop.f32.mrb[0].mxu0
    %v234 = vadd.f32 0.0, %v233
    %v235 = vpop.f32.mrb[0].mxu0
    %v236 = vadd.f32 0.0, %v235
    %237 = vmatprep.mubr.bf16.mxu0 0
    %238 = vmatmul.mubr.bf16.gmra.mrb[0].mxu0 %v75
    %v239 = vpop.f32.mrb[0].mxu0
    %v240 = vadd.f32 0.0, %v239
    %v241 = vpop.f32.mrb[0].mxu0
    %v242 = vadd.f32 0.0, %v241
    %v243 = vpop.f32.mrb[0].mxu0
    %v244 = vadd.f32 0.0, %v243
    %v245 = vpop.f32.mrb[0].mxu0
    %v246 = vadd.f32 0.0, %v245
    %247 = vmatprep.mubr.bf16.mxu0 0
    %248 = vmatmul.mubr.bf16.gmra.mrb[0].mxu0 %v76
    %v249 = vpop.f32.mrb[0].mxu0
    %v250 = vadd.f32 0.0, %v249
    %v251 = vpop.f32.mrb[0].mxu0
    %v252 = vadd.f32 0.0, %v251
    %v253 = vpop.f32.mrb[0].mxu0
    %v254 = vadd.f32 0.0, %v253
    %v255 = vpop.f32.mrb[0].mxu0
    %v256 = vadd.f32 0.0, %v255
    %257 = vmatprep.mubr.bf16.mxu0 0
    %258 = vmatmul.mubr.bf16.gmra.mrb[0].mxu0 %v77
    %v259 = vpop.f32.mrb[0].mxu0
    %v260 = vadd.f32 0.0, %v259
    %v261 = vpop.f32.mrb[0].mxu0
    %v262 = vadd.f32 0.0, %v261
    %v263 = vpop.f32.mrb[0].mxu0
    %v264 = vadd.f32 0.0, %v263
    %v265 = vpop.f32.mrb[0].mxu0
    %v266 = vadd.f32 0.0, %v265
    %267 = vmatprep.mubr.bf16.mxu0 0
    %268 = vmatmul.mubr.bf16.gmra.mrb[0].mxu0 %v78
    %v269 = vpop.f32.mrb[0].mxu0
    %v270 = vadd.f32 0.0, %v269
    %v271 = vpop.f32.mrb[0].mxu0
    %v272 = vadd.f32 0.0, %v271
    %v273 = vpop.f32.mrb[0].mxu0
    %v274 = vadd.f32 0.0, %v273
    %v275 = vpop.f32.mrb[0].mxu0
    %v276 = vadd.f32 0.0, %v275
    %277 = vmatprep.mubr.bf16.mxu0 0
    %278 = vmatmul.mubr.bf16.gmra.mrb[0].mxu0 %v79
    %v279 = vpop.f32.mrb[0].mxu0
    %v280 = vadd.f32 0.0, %v279
    %v281 = vpop.f32.mrb[0].mxu0
    %v282 = vadd.f32 0.0, %v281
    %v283 = vpop.f32.mrb[0].mxu0
    %v284 = vadd.f32 0.0, %v283
    %v285 = vpop.f32.mrb[0].mxu0
    %v286 = vadd.f32 0.0, %v285
    %287 = vmatprep.mubr.bf16.mxu0 0
    %288 = vmatmul.mubr.bf16.gmra.mrb[0].mxu0 %v80
    %v289 = vpop.f32.mrb[0].mxu0
    %v290 = vadd.f32 0.0, %v289
    %v291 = vpop.f32.mrb[0].mxu0
    %v292 = vadd.f32 0.0, %v291
    %v293 = vpop.f32.mrb[0].mxu0
    %v294 = vadd.f32 0.0, %v293
    %v295 = vpop.f32.mrb[0].mxu0
    %v296 = vadd.f32 0.0, %v295
    %297 = vmatprep.mubr.bf16.mxu0 0
    %298 = vmatmul.mubr.bf16.gmra.mrb[0].mxu0 %v81
    %v299 = vpop.f32.mrb[0].mxu0
    %v300 = vadd.f32 0.0, %v299
    %v301 = vpop.f32.mrb[0].mxu0
    %v302 = vadd.f32 0.0, %v301
    %v303 = vpop.f32.mrb[0].mxu0
    %v304 = vadd.f32 0.0, %v303
    %v305 = vpop.f32.mrb[0].mxu0
    %v306 = vadd.f32 0.0, %v305
    %307 = vmatprep.mubr.bf16.mxu0 0
    %308 = vmatmul.mubr.bf16.gmra.mrb[0].mxu0 %v82
    %v309 = vpop.f32.mrb[0].mxu0
    %v310 = vadd.f32 0.0, %v309
    %v311 = vpop.f32.mrb[0].mxu0
    %v312 = vadd.f32 0.0, %v311
    %v313 = vpop.f32.mrb[0].mxu0
    %v314 = vadd.f32 0.0, %v313
    %v315 = vpop.f32.mrb[0].mxu0
    %v316 = vadd.f32 0.0, %v315
    %317 = vmatprep.mubr.bf16.mxu0 0
    %318 = vmatmul.mubr.bf16.gmra.mrb[0].mxu0 %v83
    %v319 = vpop.f32.mrb[0].mxu0
    %v320 = vadd.f32 0.0, %v319
    %v321 = vpop.f32.mrb[0].mxu0
    %v322 = vadd.f32 0.0, %v321
    %v323 = vpop.f32.mrb[0].mxu0
    %v324 = vadd.f32 0.0, %v323
    %v325 = vpop.f32.mrb[0].mxu0
    %v326 = vadd.f32 0.0, %v325
    %327 = vmatprep.mubr.bf16.mxu0 0
    %328 = vmatmul.mubr.bf16.gmra.mrb[0].mxu0 %v84
    %v329 = vpop.f32.mrb[0].mxu0
    %v330 = vadd.f32 0.0, %v329
    %v331 = vpop.f32.mrb[0].mxu0
    %v332 = vadd.f32 0.0, %v331
    %v333 = vpop.f32.mrb[0].mxu0
    %v334 = vadd.f32 0.0, %v333
    %v335 = vpop.f32.mrb[0].mxu0
    %v336 = vadd.f32 0.0, %v335
    %337 = vmatprep.mubr.bf16.mxu0 0
    %338 = vmatmul.mubr.bf16.gmra.mrb[0].mxu0 %v85
    %v339 = vpop.f32.mrb[0].mxu0
    %v340 = vadd.f32 0.0, %v339
    %v341 = vpop.f32.mrb[0].mxu0
    %v342 = vadd.f32 0.0, %v341
    %v343 = vpop.f32.mrb[0].mxu0
    %v344 = vadd.f32 0.0, %v343
    %v345 = vpop.f32.mrb[0].mxu0
    %v346 = vadd.f32 0.0, %v345
    %347 = vmatprep.mubr.bf16.mxu0 0
    %348 = vmatmul.mubr.bf16.gmra.mrb[0].mxu0 %v86
    %v349 = vpop.f32.mrb[0].mxu0
    %v350 = vadd.f32 0.0, %v349
    %v351 = vpop.f32.mrb[0].mxu0
    %v352 = vadd.f32 0.0, %v351
    %v353 = vpop.f32.mrb[0].mxu0
    %v354 = vadd.f32 0.0, %v353
    %v355 = vpop.f32.mrb[0].mxu0
    %v356 = vadd.f32 0.0, %v355
    %357 = vmatprep.mubr.bf16.mxu0 0
    %358 = vmatmul.mubr.bf16.gmra.mrb[0].mxu0 %v87
    %v359 = vpop.f32.mrb[0].mxu0
    %v360 = vadd.f32 0.0, %v359
    %v361 = vpop.f32.mrb[0].mxu0
    %v362 = vadd.f32 0.0, %v361
    %v363 = vpop.f32.mrb[0].mxu0
    %v364 = vadd.f32 0.0, %v363
    %v365 = vpop.f32.mrb[0].mxu0
    %v366 = vadd.f32 0.0, %v365
    %367 = vmatprep.mubr.bf16.mxu0 0
    %368 = vmatmul.mubr.bf16.gmra.mrb[0].mxu0 %v88
    %v369 = vpop.f32.mrb[0].mxu0
    %v370 = vadd.f32 0.0, %v369
    %v371 = vpop.f32.mrb[0].mxu0
    %v372 = vadd.f32 0.0, %v371
    %v373 = vpop.f32.mrb[0].mxu0
    %v374 = vadd.f32 0.0, %v373
    %v375 = vpop.f32.mrb[0].mxu0
    %v376 = vadd.f32 0.0, %v375
    %377 = vdwg.mxu0
    %v378 = vpack.c.bf16 %v224, %v220
    %v379 = vpack.c.bf16 %v226, %v222
    %v380 = vpack.c.bf16 %v234, %v230
    %v381 = vpack.c.bf16 %v236, %v232
    %v382 = vpack.c.bf16 %v244, %v240
    %v383 = vpack.c.bf16 %v246, %v242
    %v384 = vpack.c.bf16 %v254, %v250
    %v385 = vpack.c.bf16 %v256, %v252
    %v386 = vpack.c.bf16 %v264, %v260
    %v387 = vpack.c.bf16 %v266, %v262
    %v388 = vpack.c.bf16 %v274, %v270
    %v389 = vpack.c.bf16 %v276, %v272
    %v390 = vpack.c.bf16 %v284, %v280
    %v391 = vpack.c.bf16 %v286, %v282
    %v392 = vpack.c.bf16 %v294, %v290
    %v393 = vpack.c.bf16 %v296, %v292
    %v394 = vpack.c.bf16 %v304, %v300
    %v395 = vpack.c.bf16 %v306, %v302
    %v396 = vpack.c.bf16 %v314, %v310
    %v397 = vpack.c.bf16 %v316, %v312
    %v398 = vpack.c.bf16 %v324, %v320
    %v399 = vpack.c.bf16 %v326, %v322
    %v400 = vpack.c.bf16 %v334, %v330
    %v401 = vpack.c.bf16 %v336, %v332
    %v402 = vpack.c.bf16 %v344, %v340
    %v403 = vpack.c.bf16 %v346, %v342
    %v404 = vpack.c.bf16 %v354, %v350
    %v405 = vpack.c.bf16 %v356, %v352
    %v406 = vpack.c.bf16 %v364, %v360
    %v407 = vpack.c.bf16 %v366, %v362
    %v408 = vpack.c.bf16 %v374, %v370
    %v409 = vpack.c.bf16 %v376, %v372
    %v442 = vunpack.c.l.b16 %v378
    %v443 = vunpack.c.l.b16 %v379
    %v444 = vunpack.c.h.b16 %v378
    %v445 = vunpack.c.h.b16 %v379
    %v446 = vunpack.c.l.b16 %v380
    %v447 = vunpack.c.l.b16 %v381
    %v448 = vunpack.c.h.b16 %v380
    %v449 = vunpack.c.h.b16 %v381
    %v450 = vunpack.c.l.b16 %v382
    %v451 = vunpack.c.l.b16 %v383
    %v452 = vunpack.c.h.b16 %v382
    %v453 = vunpack.c.h.b16 %v383
    %v454 = vunpack.c.l.b16 %v384
    %v455 = vunpack.c.l.b16 %v385
    %v456 = vunpack.c.h.b16 %v384
    %v457 = vunpack.c.h.b16 %v385
    %v458 = vunpack.c.l.b16 %v386
    %v459 = vunpack.c.l.b16 %v387
    %v460 = vunpack.c.h.b16 %v386
    %v461 = vunpack.c.h.b16 %v387
    %v462 = vunpack.c.l.b16 %v388
    %v463 = vunpack.c.l.b16 %v389
    %v464 = vunpack.c.h.b16 %v388
    %v465 = vunpack.c.h.b16 %v389
    %v466 = vunpack.c.l.b16 %v390
    %v467 = vunpack.c.l.b16 %v391
    %v468 = vunpack.c.h.b16 %v390
    %v469 = vunpack.c.h.b16 %v391
    %v470 = vunpack.c.l.b16 %v392
    %v471 = vunpack.c.l.b16 %v393
    %v472 = vunpack.c.h.b16 %v392
    %v473 = vunpack.c.h.b16 %v393
    %v474 = vunpack.c.l.b16 %v394
    %v475 = vunpack.c.l.b16 %v395
    %v476 = vunpack.c.h.b16 %v394
    %v477 = vunpack.c.h.b16 %v395
    %v478 = vunpack.c.l.b16 %v396
    %v479 = vunpack.c.l.b16 %v397
    %v480 = vunpack.c.h.b16 %v396
    %v481 = vunpack.c.h.b16 %v397
    %v482 = vunpack.c.l.b16 %v398
    %v483 = vunpack.c.l.b16 %v399
    %v484 = vunpack.c.h.b16 %v398
    %v485 = vunpack.c.h.b16 %v399
    %v486 = vunpack.c.l.b16 %v400
    %v487 = vunpack.c.l.b16 %v401
    %v488 = vunpack.c.h.b16 %v400
    %v489 = vunpack.c.h.b16 %v401
    %v490 = vunpack.c.l.b16 %v402
    %v491 = vunpack.c.l.b16 %v403
    %v492 = vunpack.c.h.b16 %v402
    %v493 = vunpack.c.h.b16 %v403
    %v494 = vunpack.c.l.b16 %v404
    %v495 = vunpack.c.l.b16 %v405
    %v496 = vunpack.c.h.b16 %v404
    %v497 = vunpack.c.h.b16 %v405
    %v498 = vunpack.c.l.b16 %v406
    %v499 = vunpack.c.l.b16 %v407
    %v500 = vunpack.c.h.b16 %v406
    %v501 = vunpack.c.h.b16 %v407
    %v502 = vunpack.c.l.b16 %v408
    %v503 = vunpack.c.l.b16 %v409
    %v504 = vunpack.c.h.b16 %v408
    %v505 = vunpack.c.h.b16 %v409
    %v506 = vpack.c.b16 %v443, %v442
    %v507 = vpack.c.b16 %v445, %v444
    %v508 = vpack.c.b16 %v447, %v446
    %v509 = vpack.c.b16 %v449, %v448
    %v510 = vpack.c.b16 %v451, %v450
    %v511 = vpack.c.b16 %v453, %v452
    %v512 = vpack.c.b16 %v455, %v454
    %v513 = vpack.c.b16 %v457, %v456
    %v514 = vpack.c.b16 %v459, %v458
    %v515 = vpack.c.b16 %v461, %v460
    %v516 = vpack.c.b16 %v463, %v462
    %v517 = vpack.c.b16 %v465, %v464
    %v518 = vpack.c.b16 %v467, %v466
    %v519 = vpack.c.b16 %v469, %v468
    %v520 = vpack.c.b16 %v471, %v470
    %v521 = vpack.c.b16 %v473, %v472
    %v522 = vpack.c.b16 %v475, %v474
    %v523 = vpack.c.b16 %v477, %v476
    %v524 = vpack.c.b16 %v479, %v478
    %v525 = vpack.c.b16 %v481, %v480
    %v526 = vpack.c.b16 %v483, %v482
    %v527 = vpack.c.b16 %v485, %v484
    %v528 = vpack.c.b16 %v487, %v486
    %v529 = vpack.c.b16 %v489, %v488
    %v530 = vpack.c.b16 %v491, %v490
    %v531 = vpack.c.b16 %v493, %v492
    %v532 = vpack.c.b16 %v495, %v494
    %v533 = vpack.c.b16 %v497, %v496
    %v534 = vpack.c.b16 %v499, %v498
    %v535 = vpack.c.b16 %v501, %v500
    %v536 = vpack.c.b16 %v503, %v502
    %v537 = vpack.c.b16 %v505, %v504
    %570 = vst [vmem:[#allocation7] sm:$0xff] %v506
    %571 = vst [vmem:[#allocation7 + $0x8] sm:$0xff] %v507
    %572 = vst [vmem:[#allocation7 + $0x10] sm:$0xff] %v508
    %573 = vst [vmem:[#allocation7 + $0x18] sm:$0xff] %v509
    %574 = vst [vmem:[#allocation7 + $0x20] sm:$0xff] %v510
    %575 = vst [vmem:[#allocation7 + $0x28] sm:$0xff] %v511
    %576 = vst [vmem:[#allocation7 + $0x30] sm:$0xff] %v512
    %577 = vst [vmem:[#allocation7 + $0x38] sm:$0xff] %v513
    %578 = vst [vmem:[#allocation7 + $0x40] sm:$0xff] %v514
    %579 = vst [vmem:[#allocation7 + $0x48] sm:$0xff] %v515
    %580 = vst [vmem:[#allocation7 + $0x50] sm:$0xff] %v516
    %581 = vst [vmem:[#allocation7 + $0x58] sm:$0xff] %v517
    %582 = vst [vmem:[#allocation7 + $0x60] sm:$0xff] %v518
    %583 = vst [vmem:[#allocation7 + $0x68] sm:$0xff] %v519
    %584 = vst [vmem:[#allocation7 + $0x70] sm:$0xff] %v520
    %585 = vst [vmem:[#allocation7 + $0x78] sm:$0xff] %v521
    %586 = vst [vmem:[#allocation7 + $0x80] sm:$0xff] %v522
    %587 = vst [vmem:[#allocation7 + $0x88] sm:$0xff] %v523
    %588 = vst [vmem:[#allocation7 + $0x90] sm:$0xff] %v524
    %589 = vst [vmem:[#allocation7 + $0x98] sm:$0xff] %v525
    %590 = vst [vmem:[#allocation7 + $0xa0] sm:$0xff] %v526
    %591 = vst [vmem:[#allocation7 + $0xa8] sm:$0xff] %v527
    %592 = vst [vmem:[#allocation7 + $0xb0] sm:$0xff] %v528
    %593 = vst [vmem:[#allocation7 + $0xb8] sm:$0xff] %v529
    %594 = vst [vmem:[#allocation7 + $0xc0] sm:$0xff] %v530
    %595 = vst [vmem:[#allocation7 + $0xc8] sm:$0xff] %v531
    %596 = vst [vmem:[#allocation7 + $0xd0] sm:$0xff] %v532
    %597 = vst [vmem:[#allocation7 + $0xd8] sm:$0xff] %v533
    %598 = vst [vmem:[#allocation7 + $0xe0] sm:$0xff] %v534
    %599 = vst [vmem:[#allocation7 + $0xe8] sm:$0xff] %v535
    %600 = vst [vmem:[#allocation7 + $0xf0] sm:$0xff] %v536
    %601 = vst [vmem:[#allocation7 + $0xf8] sm:$0xff] %v537
    // Predicated region
    $region18: #{tpu_custom_call.1} parent=1 // pred_check
      _
    $region19: #{tpu_custom_call.1} parent=1 // pred_check_branch
      %603 = sbr.rel (0) target = $region21
    $region20: #{tpu_custom_call.1} parent=1 // pred_region
      %s605 = ssub.s32 4096, 4096
      %606 = vsyncadd [#allocation4], %s605
      %s607 = sshll.u32 [#allocation7], 4
      %s608 = int_to_ptr.vmem [resolvable:$true] %s607
      %613 = dma.vmem_to_hbm [thread:$0]  %s608, 4096, %s2, [#allocation4], 128, 128, 8
    $region21: #{tpu_custom_call.1} parent=1 // pred_fallthru
      _
    // Predicated region
    $region22: #{tpu_custom_call.1} parent=1 // pred_check
      _
    $region23: #{tpu_custom_call.1} parent=1 // pred_check_branch
      %615 = sbr.rel (0) target = $region25
    $region24: #{tpu_custom_call.1} parent=1 // pred_region
      %616 = dma.done [#allocation4], 4096
    $region25: #{tpu_custom_call.1} parent=1 // pred_fallthru
      _
    %617 = vsyncpa [#allocation3], 1
    %618 = vsyncpa [#allocation6], 1
    %619 = vsyncpa [#allocation4], 1

</llo_original>
